<compile_context>
chip_gen: v5e
topology: v5e:2x2
jax: 0.10.0
libtpu: 0.0.40
codegen_flags: <defaults>
</compile_context>

<pallas_src>
import functools
import math

import jax
import jax.numpy as jnp
from jax.experimental import pallas as pl
from jax.experimental.pallas import tpu as pltpu


def _fixed_pos_emb_kernel(offset_ref, freq_ref, roff_ref, shift_ref, o_ref, *,
                          rows_per_group):
    # offset_ref: SMEM (1,) int32     freq/roff/shift: (1, kd) f32
    # o_ref:      (tile_groups, kd)   each row packs `rows_per_group` positions
    tile_groups = o_ref.shape[0]

    # Per-sublane group index -> base sequence position of that packed row.
    g = jax.lax.broadcasted_iota(jnp.int32, (tile_groups, 1), 0)
    base = (pl.program_id(0) * tile_groups + g) * rows_per_group + offset_ref[0]
    t = base.astype(jnp.float32)                                   # (tile, 1)

    # phase = (position) * inv_freq  (+ pi/2 on the cos half of each row)
    phase = (t + roff_ref[...]) * freq_ref[...] + shift_ref[...]   # (tile, kd)
    o_ref[...] = jnp.sin(phase).astype(o_ref.dtype)


def _pick_tile_groups(n_groups, kd, itemsize, requested=None):
    """Row-group tile: ~8 MiB output blocks, aligned to the dtype's sublane
    packing (8 for f32, 16 for bf16, 32 for int8/fp8), capped at n_groups."""
    sublane = max(8, 32 // max(1, itemsize))
    if requested is None:
        target_block_bytes = 8 << 20
        # Budget with >=4B/elem so f32 in-kernel temps never blow VMEM.
        requested = max(sublane, target_block_bytes // max(1, kd * max(itemsize, 4)))
    tile = max(sublane, (int(requested) // sublane) * sublane)
    if tile >= n_groups:
        return n_groups            # single full-extent block (always legal)
    return tile


def make_inv_freq(dim, dtype=jnp.float32):
    """Mirrors the registered buffer from the PyTorch module __init__."""
    inv = 1.0 / (10000.0 ** (jnp.arange(0, dim, 2, dtype=jnp.float32) / dim))
    return inv.astype(dtype)


def fixed_positional_embedding_table(inv_freq, seq_len, *, offset=0,
                                     out_dtype=None, tile_groups=None):
    """Compute the (1, seq_len, 2*len(inv_freq)) sinusoidal embedding table."""
    half = int(inv_freq.shape[-1])
    out_dim = 2 * half
    out_dtype = inv_freq.dtype if out_dtype is None else out_dtype
    itemsize = jnp.dtype(out_dtype).itemsize

    # Lane-dense packing: fold k consecutive positions per stored row so the
    # stored row width (k * out_dim) is a multiple of 128 lanes.
    k = 128 // math.gcd(out_dim, 128)
    kd = k * out_dim
    n_groups = -(-seq_len // k)                        # cdiv

    # Tiny per-lane constant rows (f32 math in-kernel, cast only at the store).
    inv_f32 = inv_freq.astype(jnp.float32)
    lane = jnp.arange(kd, dtype=jnp.int32)
    col = lane % out_dim                               # column within a position
    is_cos = col >= half
    freq_row = inv_f32[jnp.where(is_cos, col - half, col)].reshape(1, kd)
    roff_row = (lane // out_dim).astype(jnp.float32).reshape(1, kd)
    shift_row = jnp.where(is_cos,
                          jnp.float32(math.pi / 2.0),
                          jnp.float32(0.0)).reshape(1, kd)

    # Runtime scalar offset (works for Python ints and traced scalars alike).
    offset_arr = jnp.full((1,), offset, dtype=jnp.int32)

    tile_groups = _pick_tile_groups(n_groups, kd, itemsize, tile_groups)
    grid = (pl.cdiv(n_groups, tile_groups),)

    kernel = functools.partial(_fixed_pos_emb_kernel, rows_per_group=k)

    row_spec = pl.BlockSpec((1, kd), lambda i, off: (0, 0))   # resident rows

    packed = pl.pallas_call(
        kernel,
        out_shape=jax.ShapeDtypeStruct((n_groups, kd), out_dtype),
        grid_spec=pltpu.PrefetchScalarGridSpec(
            num_scalar_prefetch=1,
            grid=grid,
            in_specs=[row_spec, row_spec, row_spec],
            out_specs=pl.BlockSpec((tile_groups, kd), lambda i, off: (i, 0)),
        ),
        compiler_params=pltpu.CompilerParams(
            dimension_semantics=("parallel",),
            vmem_limit_bytes=48 << 20,
        ),
    )(offset_arr, freq_row, roff_row, shift_row)

    # Free reshape (row-major contiguous); slice only triggers a copy when
    # seq_len is not a multiple of k (small residual cost, correctness intact).
    emb = packed.reshape(n_groups * k, out_dim)[:seq_len]
    return emb[None, :, :]


def fixed_positional_embedding(x, inv_freq, seq_dim=1, offset=0):
    """Mirrors FixedPositionalEmbedding.forward(x, seq_dim, offset)."""
    return fixed_positional_embedding_table(inv_freq, x.shape[seq_dim],
                                            offset=offset)


def fixed_positional_embedding_ref(x, inv_freq, seq_dim=1, offset=0):
    """Pure-JAX reference mirroring the PyTorch forward."""
    seq_len = x.shape[seq_dim]
    t = jnp.arange(seq_len, dtype=jnp.float32) + offset
    sinusoid = jnp.einsum("i,j->ij", t, inv_freq.astype(jnp.float32))
    emb = jnp.concatenate([jnp.sin(sinusoid), jnp.cos(sinusoid)], axis=-1)
    return emb[None, :, :].astype(inv_freq.dtype)


if __name__ == "__main__":
    key = jax.random.PRNGKey(0)
    batch, seq, dim = 2, 8, 32

    # x only contributes its sequence length to the forward.
    x = jax.random.normal(key, (batch, seq, dim), dtype=jnp.float32)
    inv_freq = make_inv_freq(dim)                      # buffer, shape (16,)

    out = jax.block_until_ready(
        fixed_positional_embedding(x, inv_freq, seq_dim=1, offset=0))
    ref = fixed_positional_embedding_ref(x, inv_freq, seq_dim=1, offset=0)
    assert out.shape == (1, seq, dim), out.shape
    assert jnp.allclose(out, ref, atol=1e-5, rtol=1e-5), "mismatch vs reference"

    # Ragged sequence length + nonzero offset, with offset as a traced scalar
    # under jit (single compiled kernel serves every offset value).
    x2 = jax.random.normal(key, (1, 37, dim), dtype=jnp.float32)
    emb_fn = jax.jit(
        lambda off: fixed_positional_embedding(x2, inv_freq, seq_dim=1, offset=off))
    out2 = jax.block_until_ready(emb_fn(jnp.int32(5)))
    ref2 = fixed_positional_embedding_ref(x2, inv_freq, seq_dim=1, offset=5)
    assert out2.shape == (1, 37, dim), out2.shape
    assert jnp.allclose(out2, ref2, atol=1e-5, rtol=1e-5), "mismatch (offset case)"
    # Same compiled kernel, different offset.
    out3 = jax.block_until_ready(emb_fn(jnp.int32(11)))
    ref3 = fixed_positional_embedding_ref(x2, inv_freq, seq_dim=1, offset=11)
    assert jnp.allclose(out3, ref3, atol=1e-5, rtol=1e-5), "mismatch (offset reuse)"

    print("KERNEL_OK")
</pallas_src>

<mosaic_0001>
module attributes {stable_mosaic.version = 11 : i64} {
  func.func @_fixed_pos_emb_kernel(%arg0: i32, %arg1: memref<1xi32, #tpu.memory_space<smem>>, %arg2: memref<1x128xf32, #tpu.memory_space<vmem>>, %arg3: memref<1x128xf32, #tpu.memory_space<vmem>>, %arg4: memref<1x128xf32, #tpu.memory_space<vmem>>, %arg5: memref<2x128xf32, #tpu.memory_space<vmem>>) attributes {dimension_semantics = [#tpu.dimension_semantics<parallel>], iteration_bounds = array<i64: 1>, scalar_prefetch = 1 : i64, scratch_operands = 0 : i64, tpu.core_type = #tpu.core_type<tc>, window_params = [{pipeline_mode = #tpu.pipeline_mode<synchronous>, transform_indices = @transform_0, window_bounds = array<i64: 1, 128>}, {pipeline_mode = #tpu.pipeline_mode<synchronous>, transform_indices = @transform_1, window_bounds = array<i64: 1, 128>}, {pipeline_mode = #tpu.pipeline_mode<synchronous>, transform_indices = @transform_2, window_bounds = array<i64: 1, 128>}, {transform_indices = @transform_3, window_bounds = array<i64: 2, 128>}]} {
    %0 = tpu.iota {dimensions = array<i32: 0>} : vector<2x1xi32>
    %c2_i32 = arith.constant 2 : i32
    %1 = arith.muli %arg0, %c2_i32 : i32
    %2 = vector.broadcast %1 : i32 to vector<2x1xi32>
    %3 = arith.addi %2, %0 : vector<2x1xi32>
    %c4_i32 = arith.constant 4 : i32
    %4 = vector.broadcast %c4_i32 : i32 to vector<2x1xi32>
    %5 = arith.muli %3, %4 : vector<2x1xi32>
    %c0 = arith.constant 0 : index
    %6 = memref.load %arg1[%c0] : memref<1xi32, #tpu.memory_space<smem>>
    %7 = vector.broadcast %6 : i32 to vector<2x1xi32>
    %8 = arith.addi %5, %7 : vector<2x1xi32>
    %9 = arith.sitofp %8 : vector<2x1xi32> to vector<2x1xf32>
    %c0_0 = arith.constant 0 : index
    %c0_1 = arith.constant 0 : index
    %10 = vector.load %arg3[%c0_0, %c0_1] : memref<1x128xf32, #tpu.memory_space<vmem>>, vector<1x128xf32>
    %11 = vector.broadcast %9 : vector<2x1xf32> to vector<2x128xf32>
    %12 = vector.broadcast %10 : vector<1x128xf32> to vector<2x128xf32>
    %13 = arith.addf %11, %12 : vector<2x128xf32>
    %c0_2 = arith.constant 0 : index
    %c0_3 = arith.constant 0 : index
    %14 = vector.load %arg2[%c0_2, %c0_3] : memref<1x128xf32, #tpu.memory_space<vmem>>, vector<1x128xf32>
    %15 = vector.broadcast %14 : vector<1x128xf32> to vector<2x128xf32>
    %16 = arith.mulf %13, %15 : vector<2x128xf32>
    %c0_4 = arith.constant 0 : index
    %c0_5 = arith.constant 0 : index
    %17 = vector.load %arg4[%c0_4, %c0_5] : memref<1x128xf32, #tpu.memory_space<vmem>>, vector<1x128xf32>
    %18 = vector.broadcast %17 : vector<1x128xf32> to vector<2x128xf32>
    %19 = arith.addf %16, %18 : vector<2x128xf32>
    %20 = math.sin %19 : vector<2x128xf32>
    %c0_6 = arith.constant 0 : index
    %c0_7 = arith.constant 0 : index
    %21 = vector.load %arg5[%c0_6, %c0_7] : memref<2x128xf32, #tpu.memory_space<vmem>>, vector<2x128xf32>
    tpu.vector_store %arg5[%c0_6, %c0_7], %20 {strides = array<i32>} : memref<2x128xf32, #tpu.memory_space<vmem>>, vector<2x128xf32>,
    return
  }
  func.func @transform_0(%arg0: i32, %arg1: memref<1xi32, #tpu.memory_space<smem>>) -> (i32, i32) {
    %c0_i32 = arith.constant 0 : i32
    %c0_i32_0 = arith.constant 0 : i32
    %c0_i32_1 = arith.constant 0 : i32
    return %c0_i32, %c0_i32_0 : i32, i32
  }
  func.func @transform_1(%arg0: i32, %arg1: memref<1xi32, #tpu.memory_space<smem>>) -> (i32, i32) {
    %c0_i32 = arith.constant 0 : i32
    %c0_i32_0 = arith.constant 0 : i32
    %c0_i32_1 = arith.constant 0 : i32
    return %c0_i32, %c0_i32_0 : i32, i32
  }
  func.func @transform_2(%arg0: i32, %arg1: memref<1xi32, #tpu.memory_space<smem>>) -> (i32, i32) {
    %c0_i32 = arith.constant 0 : i32
    %c0_i32_0 = arith.constant 0 : i32
    %c0_i32_1 = arith.constant 0 : i32
    return %c0_i32, %c0_i32_0 : i32, i32
  }
  func.func @transform_3(%arg0: i32, %arg1: memref<1xi32, #tpu.memory_space<smem>>) -> (i32, i32) {
    %c0_i32 = arith.constant 0 : i32
    %c0_i32_0 = arith.constant 0 : i32
    return %arg0, %c0_i32 : i32, i32
  }
}

</mosaic_0001>

<llo_original>
// kernel: tpu_custom_call.1
$region0: #{tpu_custom_call.1}
  #allocation0 [shape = 'u32[]', space=smem, size = 0x4, offset = 0x4, fixed_abs, tag = 'smem constant byte address 0x4 - core index']
  #allocation1 [shape = 'u32[72,128]{1,0:T(1,128)}', space=vmem, size = 0x9000, scoped, tag = 'internal scratch']
  #allocation2 [shape = 's32[1]{0}', space=sflag, size = 0x4, scoped, tag = 'scoped memory for tpu_custom_call.1']
  #allocation3 [shape = 's32[1]{0:T(128)S(6)}', space=smem, size = 0x200, scoped, tag = 'prefetched SMEM operand 0']
  %s0 = inlined_call_operand.<no memory space> [shape: s32[1], index: 0, kind: input, shape index: {}]
  %s1 = inlined_call_operand.vmem [shape: f32[1,128], index: 1, kind: input, shape index: {}]
  %s2 = inlined_call_operand.vmem [shape: f32[1,128], index: 2, kind: input, shape index: {}]
  %s3 = inlined_call_operand.vmem [shape: f32[1,128], index: 3, kind: input, shape index: {}]
  %s4 = inlined_call_operand.hbm [shape: f32[2,128], index: 4, kind: output, shape index: {}]
  %s5 = sld [smem:[#allocation0]]
  $region22: #{tpu_custom_call.1} parent=0
    _
  %s7 = ssub.s32 1, %s5
  %s8 = scalar_select 0, %s7, %s5
  %9 = sst [smem:[#allocation3]] %s0
  $region1: #{tpu_custom_call.1} parent=0
    #allocation4 [shape = 'u8[1024]{0}', space=vmem, size = 0x400, scoped, tag = 'output window, operand 0, single buffered']
    #allocation5 [shape = 's32[1]{0}', space=sflag, size = 0x4, scoped, tag = 'scoped memory for tpu_custom_call.1']
    %10 = vsyncpa [#allocation5], 0
    // Predicated region
    $region2: #{tpu_custom_call.1} parent=1 // pred_check
      _
    $region3: #{tpu_custom_call.1} parent=1 // pred_check_branch
      %12 = sbr.rel (0) target = $region5
    $region4: #{tpu_custom_call.1} parent=1 // pred_region
      _
    $region5: #{tpu_custom_call.1} parent=1 // pred_fallthru
      _
    // Predicated region
    $region6: #{tpu_custom_call.1} parent=1 // pred_check
      _
    $region7: #{tpu_custom_call.1} parent=1 // pred_check_branch
      %14 = sbr.rel (0) target = $region9
    $region8: #{tpu_custom_call.1} parent=1 // pred_region
      _
    $region9: #{tpu_custom_call.1} parent=1 // pred_fallthru
      _
    // Predicated region
    $region10: #{tpu_custom_call.1} parent=1 // pred_check
      _
    $region11: #{tpu_custom_call.1} parent=1 // pred_check_branch
      %16 = sbr.rel (0) target = $region13
    $region12: #{tpu_custom_call.1} parent=1 // pred_region
      _
    $region13: #{tpu_custom_call.1} parent=1 // pred_fallthru
      _
    %v17 = vlaneseq
    %v18 = vshrl.u32 %v17, 7
    %s19 = smul.u32 0, 2
    %v20 = vstv %s19
    %v21 = vadd.s32 %v20, %v18
    %v22 = vmul.u32 %v21, 4
    %s23 = sld [smem:[#allocation3]]
    %v24 = vstv %s23
    %v25 = vadd.s32 %v22, %v24
    %v26 = vcvt.s32.f32 %v25
    %v27 = vld [vmem:[%s2] sm:$0x1]
    %v29 = vperm.slane %v27, 0
    %v31 = vadd.f32 %v26, %v29
    %v32 = vld [vmem:[%s1] sm:$0x1]
    %v34 = vperm.slane %v32, 0
    %v36 = vmul.f32 %v31, %v34
    %v37 = vld [vmem:[%s3] sm:$0x1]
    %v39 = vperm.slane %v37, 0
    %v41 = vadd.f32 %v36, %v39
    %v42 = vand.u32 2147483647, %v41
    %vm43 = vcmp.le.f32.partialorder %v42, 0.7853982
    %vm44 = vcmp.lt.s32.totalorder %v41, 0
    %v45 = vand.u32 %v41, 2139095040
    %v46 = vshrl.u32 %v45, 23
    %v47 = vsub.s32 %v46, 127
    %v48 = vand.u32 2147483647, %v41
    %v49 = vand.u32 %v48, 8388607
    %v50 = vor.u32 %v49, 8388608
    %v51 = vsub.s32 0, %v50
    %v52 = vadd.s32 %v47, 1
    %vm53 = vcmp.gt.s32.totalorder %v52, 0
    %v54 = vsel %vm53, %v52, 0
    %v55 = vshrl.u32 %v54, 5
    %v56 = vand.u32 %v54, 31
    %v57 = vsub.s32 32, %v56
    %v58 = vshrl.u32 683565275, %v57
    %v59 = vshll.u32 683565275, %v56
    %v60 = vshrl.u32 2475754826, %v57
    %v61 = vor.u32 %v59, %v60
    %v62 = vshll.u32 2475754826, %v56
    %v63 = vshrl.u32 2131351028, %v57
    %v64 = vor.u32 %v62, %v63
    %v65 = vshll.u32 2131351028, %v56
    %v66 = vshrl.u32 2102212464, %v57
    %v67 = vor.u32 %v65, %v66
    %v68 = vshll.u32 2102212464, %v56
    %v69 = vshrl.u32 920167782, %v57
    %v70 = vor.u32 %v68, %v69
    %v71 = vshll.u32 920167782, %v56
    %v72 = vshrl.u32 1326507024, %v57
    %v73 = vor.u32 %v71, %v72
    %vm74 = vcmp.lt.s32.totalorder %v55, 1
    %vm75 = vcmp.lt.s32.totalorder %v55, 2
    %vm76 = vcmp.lt.s32.totalorder %v55, 3
    %vm77 = vcmp.lt.s32.totalorder %v55, 4
    %v78 = vsel %vm74, %v58, %v61
    %v79 = vsel %vm77, %v67, 2102212464
    %v80 = vsel %vm76, %v64, %v79
    %v81 = vsel %vm75, %v78, %v80
    %v82 = vsel %vm74, %v61, %v64
    %v83 = vsel %vm77, %v70, 920167782
    %v84 = vsel %vm76, %v67, %v83
    %v85 = vsel %vm75, %v82, %v84
    %v86 = vsel %vm74, %v64, %v67
    %v87 = vsel %vm77, %v73, 1326507024
    %v88 = vsel %vm76, %v70, %v87
    %v89 = vsel %vm75, %v86, %v88
    %v90 = vshll.u32 %v50, 8
    %v91 = vand.u32 %v90, 65535
    %v92 = vshrl.u32 %v90, 16
    %v93 = vand.u32 %v89, 65535
    %v94 = vshrl.u32 %v89, 16
    %v95 = vmul.u32 %v91, %v93
    %v96 = vmul.u32 %v91, %v94
    %v97 = vmul.u32 %v92, %v93
    %v98 = vmul.u32 %v92, %v94
    %v99 = vshll.u32 %v96, 16
    %v100 = vshrl.u32 %v96, 16
    %v101 = vshll.u32 %v97, 16
    %v102 = vshrl.u32 %v97, 16
    %vm103 = vc.u32 %v95, %v99
    %v104 = vsel %vm103, 1, 0
    %v105 = vadd.s32 %v95, %v99
    %v106 = vadd.s32 %v98, %v104
    %vm107 = vc.u32 %v105, %v101
    %v108 = vsel %vm107, 1, 0
    %v109 = vadd.s32 %v105, %v101
    %v110 = vadd.s32 %v106, %v108
    %v111 = vadd.s32 %v110, %v100
    %v112 = vadd.s32 %v111, %v102
    %v113 = vand.u32 %v90, 65535
    %v114 = vshrl.u32 %v90, 16
    %v115 = vand.u32 %v85, 65535
    %v116 = vshrl.u32 %v85, 16
    %v117 = vmul.u32 %v113, %v115
    %v118 = vmul.u32 %v113, %v116
    %v119 = vmul.u32 %v114, %v115
    %v120 = vmul.u32 %v114, %v116
    %v121 = vshll.u32 %v118, 16
    %v122 = vshrl.u32 %v118, 16
    %v123 = vshll.u32 %v119, 16
    %v124 = vshrl.u32 %v119, 16
    %vm125 = vc.u32 %v117, %v121
    %v126 = vsel %vm125, 1, 0
    %v127 = vadd.s32 %v117, %v121
    %v128 = vadd.s32 %v120, %v126
    %vm129 = vc.u32 %v127, %v123
    %v130 = vsel %vm129, 1, 0
    %v131 = vadd.s32 %v127, %v123
    %v132 = vadd.s32 %v128, %v130
    %v133 = vadd.s32 %v132, %v122
    %v134 = vadd.s32 %v133, %v124
    %v135 = vmul.u32 %v90, %v81
    %v136 = vadd.s32 %v112, %v131
    %vm137 = vc.u32 %v112, %v131
    %v138 = vadd.s32 %v134, 1
    %v139 = vsel %vm137, %v138, %v134
    %v140 = vadd.s32 %v135, %v139
    %v141 = vadd.s32 %v140, 536870912
    %v142 = vshrl.u32 %v141, 30
    %v143 = vshll.u32 %v142, 30
    %v144 = vsub.s32 %v140, %v143
    %vm145 = vcmp.lt.s32.totalorder %v144, 0
    %v146 = vsub.s32 0, %v144
    %v147 = vsel %vm145, %v146, %v144
    %v148 = vclz %v147
    %v149 = vsub.s32 %v148, 2
    %vm150 = vcmp.gt.s32.totalorder 0, %v149
    %v151 = vsel %vm150, 0, %v149
    %v152 = vsub.s32 32, %v151
    %v153 = vshll.u32 %v144, %v151
    %v154 = vshrl.u32 %v136, %v152
    %v155 = vor.u32 %v153, %v154
    %v156 = vsub.s32 4294967266, %v151
    %v157 = vadd.s32 %v156, 127
    %v158 = vshll.u32 %v157, 23
    %v159 = vor.u32 4788187, %v158
    %v160 = vand.u32 2147483647, %v159
    %v162 = vcvt.s32.f32 %v155
    %v163 = vmul.f32 %v162, %v160
    %v164 = vxor.u32 %v163, 2147483648
    %v165 = vsel %vm44, %v164, %v163
    %v166 = vsub.s32 4, %v142
    %v167 = vsel %vm44, %v166, %v142
    %v168 = vsel %vm43, %v41, %v165
    %v169 = vsel %vm43, 0, %v167
    %v170 = vmul.f32 %v168, %v168
    %v171 = vmul.f32 %v170, -0.001358992
    %v172 = vadd.f32 %v171, 0.041655596
    %v173 = vmul.f32 %v170, %v172
    %v174 = vadd.f32 %v173, -0.4999988
    %v175 = vmul.f32 %v170, %v174
    %v176 = vadd.f32 1.0, %v175
    %v177 = vmul.f32 %v168, %v168
    %v178 = vmul.f32 %v177, -0.00019511016
    %v179 = vadd.f32 %v178, 0.008332121
    %v180 = vmul.f32 %v177, %v179
    %v181 = vadd.f32 %v180, -0.16666654
    %v182 = vmul.f32 %v177, %v181
    %v183 = vadd.f32 %v182, 1.0
    %v184 = vmul.f32 %v183, %v168
    %vm185 = vweird.f32 %v41
    %v186 = vadd.s32 %v169, 3
    %v187 = vand.u32 %v186, 3
    %vm188 = vcmp.lt.s32.totalorder %v187, 2
    %vm189 = vcmp.eq.s32.totalorder %v187, 0
    %v190 = vxor.u32 %v184, 2147483648
    %v191 = vsel %vm189, %v176, %v190
    %vm192 = vcmp.eq.s32.totalorder %v187, 2
    %v193 = vxor.u32 %v176, 2147483648
    %v194 = vsel %vm192, %v193, %v184
    %v195 = vsel %vm188, %v191, %v194
    %v196 = vsel %vm185, nan, %v195
    %197 = vst [vmem:[#allocation4] sm:$0x3] %v196
    // Predicated region
    $region14: #{tpu_custom_call.1} parent=1 // pred_check
      _
    $region15: #{tpu_custom_call.1} parent=1 // pred_check_branch
      %199 = sbr.rel (0) target = $region17
    $region16: #{tpu_custom_call.1} parent=1 // pred_region
      %201 = vsyncadd [#allocation5], 0
      %s203 = sshll.u32 [#allocation4], 4
      %s204 = int_to_ptr.vmem [resolvable:$true] %s203
      %s205 = sshll.u32 %s4, 4
      %s206 = int_to_ptr.hbm [resolvable:$true] %s205
      %208 = dma.vmem_to_hbm [thread:$0]  %s204, 32, %s206, [#allocation5]
    $region17: #{tpu_custom_call.1} parent=1 // pred_fallthru
      _
    // Predicated region
    $region18: #{tpu_custom_call.1} parent=1 // pred_check
      _
    $region19: #{tpu_custom_call.1} parent=1 // pred_check_branch
      %210 = sbr.rel (0) target = $region21
    $region20: #{tpu_custom_call.1} parent=1 // pred_region
      %212 = dma.done [#allocation5], 32
    $region21: #{tpu_custom_call.1} parent=1 // pred_fallthru
      _
    %213 = vsyncpa [#allocation5], 1

</llo_original>
